<compile_context>
chip_gen: v7x
topology: tpu7x:2x2x1
jax: 0.10.0
libtpu: 0.0.40
codegen_flags: <defaults>
</compile_context>

<pallas_src>
import functools
import math

import jax
import jax.numpy as jnp
from jax import lax
from jax.experimental import pallas as pl
from jax.experimental.pallas import tpu as pltpu

LN_EPS = 1e-12  # HF Electra default layer_norm_eps


# ---------------------------------------------------------------------------
# In-kernel helpers
# ---------------------------------------------------------------------------
def _layer_norm(x, gamma, beta):
    mean = jnp.mean(x, axis=-1, keepdims=True)
    var = jnp.mean(jnp.square(x - mean), axis=-1, keepdims=True)
    return (x - mean) * lax.rsqrt(var + LN_EPS) * gamma + beta


# ---------------------------------------------------------------------------
# Kernels
# ---------------------------------------------------------------------------
def attention_block_kernel(num_heads, head_dim,
                           x_ref, wqkv_ref, bqkv_ref, wo_ref, bo_ref,
                           g_ref, beta_ref, out_ref):
    H = num_heads * head_dim
    x = x_ref[0]                                               # (S, H) bf16
    S = x.shape[0]

    # Fused Q/K/V projection: one MXU op with N = 3H (bf16 in, f32 acc).
    qkv = jnp.dot(x, wqkv_ref[...], preferred_element_type=jnp.float32)
    qkv = qkv + bqkv_ref[...]                                  # (S, 3H) f32

    def heads(t):                                              # (S, H) -> (nh, S, dh)
        return (t.reshape(S, num_heads, head_dim)
                 .transpose(1, 0, 2)
                 .astype(jnp.bfloat16))

    q = heads(qkv[:, :H])           # 1/sqrt(dh) already folded into Wq/bq
    k = heads(qkv[:, H:2 * H])
    v = heads(qkv[:, 2 * H:])

    # Heads-batched attention (single batched MXU op per stage).
    s = jnp.einsum("hqd,hkd->hqk", q, k, preferred_element_type=jnp.float32)
    s = s - jnp.max(s, axis=-1, keepdims=True)
    e = jnp.exp(s)
    p = e * pl.reciprocal(jnp.sum(e, axis=-1, keepdims=True), approx=True)
    ctx = jnp.einsum("hqk,hkd->hqd", p.astype(jnp.bfloat16), v,
                     preferred_element_type=jnp.float32)       # (nh, S, dh)
    ctx = ctx.transpose(1, 0, 2).reshape(S, H)

    attn = jnp.dot(ctx.astype(jnp.bfloat16), wo_ref[...],
                   preferred_element_type=jnp.float32) + bo_ref[...]
    y = _layer_norm(attn + x.astype(jnp.float32), g_ref[...], beta_ref[...])
    out_ref[0] = y.astype(out_ref.dtype)


def ffn_block_kernel(x_ref, wi_ref, bi_ref, wo_ref, bo_ref,
                     g_ref, beta_ref, out_ref):
    x = x_ref[0]                                               # (tr, H) bf16
    inter = jnp.dot(x, wi_ref[...],
                    preferred_element_type=jnp.float32) + bi_ref[...]
    # TODO(synk): HF Electra's default act is exact (erf) GELU; the tanh
    # approximation is used here (and in the reference) for a guaranteed
    # Mosaic/EUP lowering.
    inter = jax.nn.gelu(inter, approximate=True)
    y = jnp.dot(inter.astype(jnp.bfloat16), wo_ref[...],
                preferred_element_type=jnp.float32) + bo_ref[...]
    y = _layer_norm(y + x.astype(jnp.float32), g_ref[...], beta_ref[...])
    out_ref[0] = y.astype(out_ref.dtype)


# ---------------------------------------------------------------------------
# pallas_call wrappers
# ---------------------------------------------------------------------------
def _pinned_spec(shape):
    """Full-array weight block, pinned at (0,0) for every grid step, single-buffered."""
    assert len(shape) == 2
    idx = lambda *_: (0, 0)
    try:
        return pl.BlockSpec(shape, idx, pipeline_mode=pl.Buffered(1))
    except (TypeError, AttributeError):
        # Older Pallas without pipeline_mode: fall back to default buffering.
        return pl.BlockSpec(shape, idx)


def _row_tile(S):
    for t in (512, 256, 128, 64, 32, 16, 8):
        if S % t == 0:
            return t
    return S


def _compiler_params(dim_semantics, weight_bytes, act_block_bytes, extra_f32_elems):
    # weights ~single-buffered; in+out activation blocks double-buffered;
    # extra_f32_elems approximates the kernel's f32 value intermediates.
    need = int(weight_bytes + 4 * act_block_bytes + 4 * extra_f32_elems)
    limit = int(min(max(2 * need, 8 << 20), 96 << 20))
    return pltpu.CompilerParams(dimension_semantics=dim_semantics,
                                vmem_limit_bytes=limit)


def electra_attention_block(x, p, num_heads):
    B, S, H = x.shape
    head_dim = H // num_heads
    act_spec = pl.BlockSpec((1, S, H), lambda b: (b, 0, 0))

    weights = (p["wqkv"], p["bqkv"], p["wo"], p["bo"], p["ln_g"], p["ln_b"])
    in_specs = [act_spec] + [_pinned_spec(w.shape) for w in weights]

    weight_bytes = sum(int(w.size) * w.dtype.itemsize for w in weights)
    act_block_bytes = S * H * x.dtype.itemsize
    extra_f32 = 5 * S * H + 2 * num_heads * S * S   # qkv, ctx, attn, scores, probs

    return pl.pallas_call(
        functools.partial(attention_block_kernel, num_heads, head_dim),
        out_shape=jax.ShapeDtypeStruct((B, S, H), x.dtype),
        grid=(B,),
        in_specs=in_specs,
        out_specs=act_spec,
        compiler_params=_compiler_params(("parallel",), weight_bytes,
                                         act_block_bytes, extra_f32),
    )(x, *weights)


def electra_ffn_block(x, p):
    B, S, H = x.shape
    I = p["wi"].shape[1]
    tr = _row_tile(S)
    act_spec = pl.BlockSpec((1, tr, H), lambda b, s: (b, s, 0))

    weights = (p["wi"], p["bi"], p["wo"], p["bo"], p["ln_g"], p["ln_b"])
    in_specs = [act_spec] + [_pinned_spec(w.shape) for w in weights]

    weight_bytes = sum(int(w.size) * w.dtype.itemsize for w in weights)
    act_block_bytes = tr * H * x.dtype.itemsize
    extra_f32 = 2 * tr * I + 2 * tr * H

    return pl.pallas_call(
        ffn_block_kernel,
        out_shape=jax.ShapeDtypeStruct((B, S, H), x.dtype),
        grid=(B, S // tr),
        in_specs=in_specs,
        out_specs=act_spec,
        compiler_params=_compiler_params(("parallel", "parallel"), weight_bytes,
                                         act_block_bytes, extra_f32),
    )(x, *weights)


# ---------------------------------------------------------------------------
# Host-side weight preparation (one-time): fuse QKV, fold the attention scale,
# transpose to (in, out) layout, cast matmul weights to bf16.
# ---------------------------------------------------------------------------
def prepare_params(layer_params, num_heads, compute_dtype=jnp.bfloat16):
    prepared = []
    for p in layer_params:
        a, f = p["attention"], p["ffn"]
        H = a["wq"].shape[0]
        I = f["wi"].shape[0]
        scale = 1.0 / math.sqrt(H // num_heads)
        wqkv = jnp.concatenate([a["wq"] * scale, a["wk"], a["wv"]], axis=0).T
        bqkv = jnp.concatenate([a["bq"] * scale, a["bk"], a["bv"]]).reshape(1, 3 * H)
        prepared.append({
            "attention": {
                "wqkv": wqkv.astype(compute_dtype),                 # (H, 3H)
                "bqkv": bqkv.astype(jnp.float32),
                "wo": a["wo"].T.astype(compute_dtype),              # (H, H)
                "bo": a["bo"].reshape(1, H).astype(jnp.float32),
                "ln_g": a["ln_g"].reshape(1, H).astype(jnp.float32),
                "ln_b": a["ln_b"].reshape(1, H).astype(jnp.float32),
            },
            "ffn": {
                "wi": f["wi"].T.astype(compute_dtype),              # (H, I)
                "bi": f["bi"].reshape(1, I).astype(jnp.float32),
                "wo": f["wo"].T.astype(compute_dtype),              # (I, H)
                "bo": f["bo"].reshape(1, H).astype(jnp.float32),
                "ln_g": f["ln_g"].reshape(1, H).astype(jnp.float32),
                "ln_b": f["ln_b"].reshape(1, H).astype(jnp.float32),
            },
        })
    return prepared


def fi_electra_encoder(hidden_states, layer_params, num_heads,
                       compute_dtype=jnp.bfloat16):
    """FiElectraEncoder.forward with default (None) optional arguments."""
    # TODO(synk): attention_mask / head_mask / cross-attention / past_key_values
    # / use_cache / global_tokens_embed / relative-position embeddings are not
    # implemented (the module's defaults skip them).
    params = prepare_params(layer_params, num_heads, compute_dtype)
    x = hidden_states.astype(compute_dtype)
    for p in params:
        x = electra_attention_block(x, p["attention"], num_heads)
        x = electra_ffn_block(x, p["ffn"])
    return x.astype(hidden_states.dtype)


# ---------------------------------------------------------------------------
# Pure-JAX f32 reference (same math as the PyTorch module in eval mode)
# ---------------------------------------------------------------------------
def _ref_ln(x, g, b):
    m = jnp.mean(x, axis=-1, keepdims=True)
    v = jnp.mean(jnp.square(x - m), axis=-1, keepdims=True)
    return (x - m) / jnp.sqrt(v + LN_EPS) * g + b


def ref_encoder(x, layer_params, num_heads):
    B, S, H = x.shape
    dh = H // num_heads
    for p in layer_params:
        a = p["attention"]
        q = x @ a["wq"].T + a["bq"]
        k = x @ a["wk"].T + a["bk"]
        v = x @ a["wv"].T + a["bv"]

        def split(t):
            return t.reshape(B, S, num_heads, dh).transpose(0, 2, 1, 3)

        qh, kh, vh = split(q), split(k), split(v)
        s = jnp.einsum("bhqd,bhkd->bhqk", qh, kh) / math.sqrt(dh)
        probs = jax.nn.softmax(s, axis=-1)
        ctx = jnp.einsum("bhqk,bhkd->bhqd", probs, vh)
        ctx = ctx.transpose(0, 2, 1, 3).reshape(B, S, H)
        x1 = _ref_ln(ctx @ a["wo"].T + a["bo"] + x, a["ln_g"], a["ln_b"])

        f = p["ffn"]
        inter = jax.nn.gelu(x1 @ f["wi"].T + f["bi"], approximate=True)
        x = _ref_ln(inter @ f["wo"].T + f["bo"] + x1, f["ln_g"], f["ln_b"])
    return x


# ---------------------------------------------------------------------------
# Parameter construction (PyTorch Linear layout; values rounded to be exactly
# bf16-representable so the f32 reference and the bf16-MXU kernel share operands).
# ---------------------------------------------------------------------------
def _bf16_round(x):
    return x.astype(jnp.bfloat16).astype(jnp.float32)


def init_params(key, num_layers, H, inter_size):
    layers = []
    for _ in range(num_layers):
        key, *ks = jax.random.split(key, 17)

        def lin(kw, kb, out_f, in_f):
            w = jax.random.normal(kw, (out_f, in_f), jnp.float32) / math.sqrt(in_f)
            b = jax.random.normal(kb, (out_f,), jnp.float32) * 0.02
            return _bf16_round(w), _bf16_round(b)

        wq, bq = lin(ks[0], ks[1], H, H)
        wk, bk = lin(ks[2], ks[3], H, H)
        wv, bv = lin(ks[4], ks[5], H, H)
        wo, bo = lin(ks[6], ks[7], H, H)
        wi, bi = lin(ks[8], ks[9], inter_size, H)
        wo2, bo2 = lin(ks[10], ks[11], H, inter_size)
        layers.append({
            "attention": {
                "wq": wq, "bq": bq, "wk": wk, "bk": bk, "wv": wv, "bv": bv,
                "wo": wo, "bo": bo,
                "ln_g": _bf16_round(1.0 + 0.1 * jax.random.normal(ks[12], (H,), jnp.float32)),
                "ln_b": _bf16_round(0.1 * jax.random.normal(ks[13], (H,), jnp.float32)),
            },
            "ffn": {
                "wi": wi, "bi": bi, "wo": wo2, "bo": bo2,
                "ln_g": _bf16_round(1.0 + 0.1 * jax.random.normal(ks[14], (H,), jnp.float32)),
                "ln_b": _bf16_round(0.1 * jax.random.normal(ks[15], (H,), jnp.float32)),
            },
        })
    return layers


if __name__ == "__main__":
    B, S, H = 2, 8, 32
    NUM_HEADS = 2
    INTERMEDIATE = 64
    NUM_LAYERS = 2

    key = jax.random.PRNGKey(0)
    k_x, k_p = jax.random.split(key)
    hidden_states = _bf16_round(jax.random.normal(k_x, (B, S, H), dtype=jnp.float32))
    layer_params = init_params(k_p, NUM_LAYERS, H, INTERMEDIATE)

    out = fi_electra_encoder(hidden_states, layer_params, NUM_HEADS)
    out = jax.block_until_ready(out)

    ref = ref_encoder(hidden_states, layer_params, NUM_HEADS)
    assert out.shape == (B, S, H)
    assert out.dtype == hidden_states.dtype
    # Kernel runs matmuls in bf16 with f32 accumulation; reference is pure f32,
    # hence the modest tolerance.
    err = float(jnp.max(jnp.abs(out.astype(jnp.float32) - ref)))
    assert jnp.allclose(out.astype(jnp.float32), ref, atol=3e-2, rtol=3e-2), err

    print("KERNEL_OK")
</pallas_src>

<mosaic_0001>
module attributes {stable_mosaic.version = 11 : i64} {
  func.func @attention_block_kernel(%arg0: i32, %arg1: memref<1x8x32xbf16, #tpu.memory_space<vmem>>, %arg2: memref<32x96xbf16, #tpu.memory_space<vmem>>, %arg3: memref<1x96xf32, #tpu.memory_space<vmem>>, %arg4: memref<32x32xbf16, #tpu.memory_space<vmem>>, %arg5: memref<1x32xf32, #tpu.memory_space<vmem>>, %arg6: memref<1x32xf32, #tpu.memory_space<vmem>>, %arg7: memref<1x32xf32, #tpu.memory_space<vmem>>, %arg8: memref<1x8x32xbf16, #tpu.memory_space<vmem>>) attributes {dimension_semantics = [#tpu.dimension_semantics<parallel>], iteration_bounds = array<i64: 2>, scalar_prefetch = 0 : i64, scratch_operands = 0 : i64, tpu.core_type = #tpu.core_type<tc>, window_params = [{transform_indices = @transform_0, window_bounds = array<i64: 1, 8, 32>}, {pipeline_mode = #tpu.pipeline_mode<synchronous>, transform_indices = @transform_1, window_bounds = array<i64: 32, 96>}, {pipeline_mode = #tpu.pipeline_mode<synchronous>, transform_indices = @transform_2, window_bounds = array<i64: 1, 96>}, {pipeline_mode = #tpu.pipeline_mode<synchronous>, transform_indices = @transform_3, window_bounds = array<i64: 32, 32>}, {pipeline_mode = #tpu.pipeline_mode<synchronous>, transform_indices = @transform_4, window_bounds = array<i64: 1, 32>}, {pipeline_mode = #tpu.pipeline_mode<synchronous>, transform_indices = @transform_5, window_bounds = array<i64: 1, 32>}, {pipeline_mode = #tpu.pipeline_mode<synchronous>, transform_indices = @transform_6, window_bounds = array<i64: 1, 32>}, {transform_indices = @transform_7, window_bounds = array<i64: 1, 8, 32>}]} {
    %c0 = arith.constant 0 : index
    %c0_0 = arith.constant 0 : index
    %c0_1 = arith.constant 0 : index
    %0 = vector.load %arg1[%c0, %c0_0, %c0_1] : memref<1x8x32xbf16, #tpu.memory_space<vmem>>, vector<1x8x32xbf16>
    %1 = vector.shape_cast %0 : vector<1x8x32xbf16> to vector<8x32xbf16>
    %c0_2 = arith.constant 0 : index
    %c0_3 = arith.constant 0 : index
    %2 = vector.load %arg2[%c0_2, %c0_3] : memref<32x96xbf16, #tpu.memory_space<vmem>>, vector<32x96xbf16>
    %cst = arith.constant dense<0.000000e+00> : vector<8x96xf32>
    %3 = tpu.matmul %1, %2, %cst {dimension_numbers = #tpu.dot_dimension_numbers<[1], [0], [0], [1], [0, 0, 1, 1], [], []>} : vector<8x32xbf16>, vector<32x96xbf16>, vector<8x96xf32> -> vector<8x96xf32>
    %c0_4 = arith.constant 0 : index
    %c0_5 = arith.constant 0 : index
    %4 = vector.load %arg3[%c0_4, %c0_5] : memref<1x96xf32, #tpu.memory_space<vmem>>, vector<1x96xf32>
    %5 = vector.broadcast %4 : vector<1x96xf32> to vector<8x96xf32>
    %6 = arith.addf %3, %5 : vector<8x96xf32>
    %7 = vector.extract_strided_slice %6 {offsets = [0, 0], sizes = [8, 32], strides = [1, 1]} : vector<8x96xf32> to vector<8x32xf32>
    %8 = vector.shape_cast %7 : vector<8x32xf32> to vector<8x2x16xf32>
    %9 = tpu.transpose %8, [1, 0, 2] : vector<8x2x16xf32> -> vector<2x8x16xf32>
    %10 = arith.truncf %9 : vector<2x8x16xf32> to vector<2x8x16xbf16>
    %11 = vector.extract_strided_slice %6 {offsets = [0, 32], sizes = [8, 32], strides = [1, 1]} : vector<8x96xf32> to vector<8x32xf32>
    %12 = vector.shape_cast %11 : vector<8x32xf32> to vector<8x2x16xf32>
    %13 = tpu.transpose %12, [1, 0, 2] : vector<8x2x16xf32> -> vector<2x8x16xf32>
    %14 = arith.truncf %13 : vector<2x8x16xf32> to vector<2x8x16xbf16>
    %15 = vector.extract_strided_slice %6 {offsets = [0, 64], sizes = [8, 32], strides = [1, 1]} : vector<8x96xf32> to vector<8x32xf32>
    %16 = vector.shape_cast %15 : vector<8x32xf32> to vector<8x2x16xf32>
    %17 = tpu.transpose %16, [1, 0, 2] : vector<8x2x16xf32> -> vector<2x8x16xf32>
    %18 = arith.truncf %17 : vector<2x8x16xf32> to vector<2x8x16xbf16>
    "tpu.trace_start"() <{level = 10 : i32, message = "hqd,hkd->hqk"}> : () -> ()
    %cst_6 = arith.constant dense<0.000000e+00> : vector<2x8x8xf32>
    %19 = tpu.matmul %10, %14, %cst_6 {dimension_numbers = #tpu.dot_dimension_numbers<[2], [2], [1], [1], [0, 0, 0, 1, 1, 1], [0], [0]>} : vector<2x8x16xbf16>, vector<2x8x16xbf16>, vector<2x8x8xf32> -> vector<2x8x8xf32>
    "tpu.trace_stop"() : () -> ()
    %cst_7 = arith.constant dense<0xFF800000> : vector<2x8xf32>
    %20 = vector.multi_reduction <maximumf>, %19, %cst_7 [2] : vector<2x8x8xf32> to vector<2x8xf32>
    %21 = vector.shape_cast %20 : vector<2x8xf32> to vector<2x8x1xf32>
    %22 = vector.broadcast %21 : vector<2x8x1xf32> to vector<2x8x8xf32>
    %23 = arith.subf %19, %22 : vector<2x8x8xf32>
    %24 = math.exp %23 : vector<2x8x8xf32>
    %cst_8 = arith.constant dense<0.000000e+00> : vector<2x8xf32>
    %25 = vector.multi_reduction <add>, %24, %cst_8 [2] : vector<2x8x8xf32> to vector<2x8xf32>
    %26 = vector.shape_cast %25 : vector<2x8xf32> to vector<2x8x1xf32>
    %27 = tpu.reciprocal %26 {approx = true} : vector<2x8x1xf32> -> vector<2x8x1xf32>
    %28 = vector.broadcast %27 : vector<2x8x1xf32> to vector<2x8x8xf32>
    %29 = arith.mulf %24, %28 : vector<2x8x8xf32>
    %30 = arith.truncf %29 : vector<2x8x8xf32> to vector<2x8x8xbf16>
    "tpu.trace_start"() <{level = 10 : i32, message = "hqk,hkd->hqd"}> : () -> ()
    %cst_9 = arith.constant dense<0.000000e+00> : vector<2x8x16xf32>
    %31 = tpu.matmul %30, %18, %cst_9 {dimension_numbers = #tpu.dot_dimension_numbers<[2], [1], [1], [2], [0, 0, 0, 1, 1, 2], [0], [0]>} : vector<2x8x8xbf16>, vector<2x8x16xbf16>, vector<2x8x16xf32> -> vector<2x8x16xf32>
    "tpu.trace_stop"() : () -> ()
    %32 = tpu.transpose %31, [1, 0, 2] : vector<2x8x16xf32> -> vector<8x2x16xf32>
    %33 = vector.shape_cast %32 : vector<8x2x16xf32> to vector<8x32xf32>
    %34 = arith.truncf %33 : vector<8x32xf32> to vector<8x32xbf16>
    %c0_10 = arith.constant 0 : index
    %c0_11 = arith.constant 0 : index
    %35 = vector.load %arg4[%c0_10, %c0_11] : memref<32x32xbf16, #tpu.memory_space<vmem>>, vector<32x32xbf16>
    %cst_12 = arith.constant dense<0.000000e+00> : vector<8x32xf32>
    %36 = tpu.matmul %34, %35, %cst_12 {dimension_numbers = #tpu.dot_dimension_numbers<[1], [0], [0], [1], [0, 0, 1, 1], [], []>} : vector<8x32xbf16>, vector<32x32xbf16>, vector<8x32xf32> -> vector<8x32xf32>
    %c0_13 = arith.constant 0 : index
    %c0_14 = arith.constant 0 : index
    %37 = vector.load %arg5[%c0_13, %c0_14] : memref<1x32xf32, #tpu.memory_space<vmem>>, vector<1x32xf32>
    %38 = vector.broadcast %37 : vector<1x32xf32> to vector<8x32xf32>
    %39 = arith.addf %36, %38 : vector<8x32xf32>
    %40 = arith.extf %1 : vector<8x32xbf16> to vector<8x32xf32>
    %41 = arith.addf %39, %40 : vector<8x32xf32>
    %c0_15 = arith.constant 0 : index
    %c0_16 = arith.constant 0 : index
    %42 = vector.load %arg6[%c0_15, %c0_16] : memref<1x32xf32, #tpu.memory_space<vmem>>, vector<1x32xf32>
    %c0_17 = arith.constant 0 : index
    %c0_18 = arith.constant 0 : index
    %43 = vector.load %arg7[%c0_17, %c0_18] : memref<1x32xf32, #tpu.memory_space<vmem>>, vector<1x32xf32>
    %cst_19 = arith.constant dense<0.000000e+00> : vector<8xf32>
    %44 = vector.multi_reduction <add>, %41, %cst_19 [1] : vector<8x32xf32> to vector<8xf32>
    %45 = vector.shape_cast %44 : vector<8xf32> to vector<8x1xf32>
    %cst_20 = arith.constant 3.200000e+01 : f32
    %46 = vector.broadcast %cst_20 : f32 to vector<8x1xf32>
    %47 = arith.divf %45, %46 : vector<8x1xf32>
    %48 = vector.broadcast %47 : vector<8x1xf32> to vector<8x32xf32>
    %49 = arith.subf %41, %48 : vector<8x32xf32>
    %50 = arith.mulf %49, %49 : vector<8x32xf32>
    %cst_21 = arith.constant dense<0.000000e+00> : vector<8xf32>
    %51 = vector.multi_reduction <add>, %50, %cst_21 [1] : vector<8x32xf32> to vector<8xf32>
    %52 = vector.shape_cast %51 : vector<8xf32> to vector<8x1xf32>
    %cst_22 = arith.constant 3.200000e+01 : f32
    %53 = vector.broadcast %cst_22 : f32 to vector<8x1xf32>
    %54 = arith.divf %52, %53 : vector<8x1xf32>
    %55 = vector.broadcast %47 : vector<8x1xf32> to vector<8x32xf32>
    %56 = arith.subf %41, %55 : vector<8x32xf32>
    %cst_23 = arith.constant 9.99999996E-13 : f32
    %57 = vector.broadcast %cst_23 : f32 to vector<8x1xf32>
    %58 = arith.addf %54, %57 : vector<8x1xf32>
    %59 = math.rsqrt %58 : vector<8x1xf32>
    %60 = vector.broadcast %59 : vector<8x1xf32> to vector<8x32xf32>
    %61 = arith.mulf %56, %60 : vector<8x32xf32>
    %62 = vector.broadcast %42 : vector<1x32xf32> to vector<8x32xf32>
    %63 = arith.mulf %61, %62 : vector<8x32xf32>
    %64 = vector.broadcast %43 : vector<1x32xf32> to vector<8x32xf32>
    %65 = arith.addf %63, %64 : vector<8x32xf32>
    %66 = arith.truncf %65 : vector<8x32xf32> to vector<8x32xbf16>
    %c0_24 = arith.constant 0 : index
    %c0_25 = arith.constant 0 : index
    %c0_26 = arith.constant 0 : index
    %67 = vector.load %arg8[%c0_24, %c0_25, %c0_26] : memref<1x8x32xbf16, #tpu.memory_space<vmem>>, vector<1x8x32xbf16>
    %68 = vector.shape_cast %67 : vector<1x8x32xbf16> to vector<8x32xbf16>
    %69 = vector.shape_cast %66 : vector<8x32xbf16> to vector<1x8x32xbf16>
    tpu.vector_store %arg8[%c0_24, %c0_25, %c0_26], %69 {strides = array<i32>} : memref<1x8x32xbf16, #tpu.memory_space<vmem>>, vector<1x8x32xbf16>,
    return
  }
  func.func @transform_0(%arg0: i32) -> (i32, i32, i32) {
    %c0_i32 = arith.constant 0 : i32
    %c0_i32_0 = arith.constant 0 : i32
    %c0_i32_1 = arith.constant 0 : i32
    return %arg0, %c0_i32, %c0_i32_0 : i32, i32, i32
  }
  func.func @transform_1(%arg0: i32) -> (i32, i32) {
    %c0_i32 = arith.constant 0 : i32
    %c0_i32_0 = arith.constant 0 : i32
    %c0_i32_1 = arith.constant 0 : i32
    return %c0_i32, %c0_i32_0 : i32, i32
  }
  func.func @transform_2(%arg0: i32) -> (i32, i32) {
    %c0_i32 = arith.constant 0 : i32
    %c0_i32_0 = arith.constant 0 : i32
    %c0_i32_1 = arith.constant 0 : i32
    return %c0_i32, %c0_i32_0 : i32, i32
  }
  func.func @transform_3(%arg0: i32) -> (i32, i32) {
    %c0_i32 = arith.constant 0 : i32
    %c0_i32_0 = arith.constant 0 : i32
    %c0_i32_1 = arith.constant 0 : i32
    return %c0_i32, %c0_i32_0 : i32, i32
  }
  func.func @transform_4(%arg0: i32) -> (i32, i32) {
    %c0_i32 = arith.constant 0 : i32
    %c0_i32_0 = arith.constant 0 : i32
    %c0_i32_1 = arith.constant 0 : i32
    return %c0_i32, %c0_i32_0 : i32, i32
  }
  func.func @transform_5(%arg0: i32) -> (i32, i32) {
    %c0_i32 = arith.constant 0 : i32
    %c0_i32_0 = arith.constant 0 : i32
    %c0_i32_1 = arith.constant 0 : i32
    return %c0_i32, %c0_i32_0 : i32, i32
  }
  func.func @transform_6(%arg0: i32) -> (i32, i32) {
    %c0_i32 = arith.constant 0 : i32
    %c0_i32_0 = arith.constant 0 : i32
    %c0_i32_1 = arith.constant 0 : i32
    return %c0_i32, %c0_i32_0 : i32, i32
  }
  func.func @transform_7(%arg0: i32) -> (i32, i32, i32) {
    %c0_i32 = arith.constant 0 : i32
    %c0_i32_0 = arith.constant 0 : i32
    %c0_i32_1 = arith.constant 0 : i32
    return %arg0, %c0_i32, %c0_i32_0 : i32, i32, i32
  }
}

</mosaic_0001>

<llo_original>
// kernel: tpu_custom_call.1
$region0: #{tpu_custom_call.1}
  #allocation0 [shape = 'u32[]', space=smem, size = 0x4, offset = 0x4, fixed_abs, tag = 'smem constant byte address 0x4 - core index']
  #allocation1 [shape = 'u32[144,128]{1,0:T(1,128)}', space=vmem, size = 0x12000, scoped, tag = 'internal scratch']
  %s0 = inlined_call_operand.hbm [shape: bf16[2,8,32], index: 0, kind: input, shape index: {}]
  %s1 = inlined_call_operand.hbm [shape: bf16[32,96], index: 1, kind: input, shape index: {}]
  %s2 = inlined_call_operand.vmem [shape: f32[1,96], index: 2, kind: input, shape index: {}]
  %s3 = inlined_call_operand.hbm [shape: bf16[32,32], index: 3, kind: input, shape index: {}]
  %s4 = inlined_call_operand.vmem [shape: f32[1,32], index: 4, kind: input, shape index: {}]
  %s5 = inlined_call_operand.vmem [shape: f32[1,32], index: 5, kind: input, shape index: {}]
  %s6 = inlined_call_operand.vmem [shape: f32[1,32], index: 6, kind: input, shape index: {}]
  %s7 = inlined_call_operand.hbm [shape: bf16[2,8,32], index: 7, kind: output, shape index: {}]
  %s8 = sld [smem:[#allocation0]]
  $region73: #{tpu_custom_call.1} parent=0
    _
  %s10 = ssub.s32 1, %s8
  %s11 = scalar_select 0, %s10, %s8
  $region1: #{tpu_custom_call.1} parent=0
    #allocation2 [shape = 'u8[4096]{0}', space=vmem, size = 0x1000, scoped, tag = 'input window, operand 0']
    #allocation3 [shape = 's32[2]{0}', space=sflag, size = 0x8, scoped, tag = 'scoped memory for tpu_custom_call.1']
    #allocation4 [shape = 's32[2]{0}', space=sflag, size = 0x8, scoped, tag = 'scoped memory for tpu_custom_call.1']
    #allocation5 [shape = 'u8[8192]{0}', space=vmem, size = 0x2000, scoped, tag = 'input window, operand 1, single buffered']
    #allocation6 [shape = 's32[1]{0}', space=sflag, size = 0x4, scoped, tag = 'scoped memory for tpu_custom_call.1']
    #allocation7 [shape = 'u8[8192]{0}', space=vmem, size = 0x2000, scoped, tag = 'input window, operand 3, single buffered']
    #allocation8 [shape = 'u8[4096]{0}', space=vmem, size = 0x1000, scoped, tag = 'output window, operand 0']
    %12 = vsyncpa [#allocation3], 0
    %s13 = scalar_lea.sflag [#allocation3], 1
    %14 = vsyncpa %s13, 0
    %15 = vsyncpa [#allocation6], 0
    %16 = vsyncpa [#allocation4], 0
    %s17 = scalar_lea.sflag [#allocation4], 1
    %18 = vsyncpa %s17, 0
    loop: start=0, step=1, limit=4
    $region2: #{tpu_custom_call.1} parent=1 // loop_pre_header
      _
    $region3: #{tpu_custom_call.1} parent=1 // loop_header
      %s20 = sphi 0, %s24
      %p21 = scmp.ge.s32.totalorder %s20, 4
      %s30 = sphi 0, %s32
      %s33 = sphi 0, %s30
      %s34 = sphi 0, %s33
      %s50 = sphi 0, %s34
      %s54 = sphi 0, %s54
      %s56 = sphi 0, %s54
      %s57 = sphi 0, %s56
      %s71 = sphi 0, %s57
      %s75 = sphi 0, %s75
      %s77 = sphi 0, %s75
      %s78 = sphi 0, %s77
      %s92 = sphi 0, %s78
      %s96 = sphi 0, %s96
      %s98 = sphi 0, %s96
      %s99 = sphi 0, %s98
      %s113 = sphi 0, %s99
      %s117 = sphi 0, %s117
      %s119 = sphi 0, %s117
      %s120 = sphi 0, %s119
      %s134 = sphi 0, %s120
      %s138 = sphi 0, %s138
      %s140 = sphi 0, %s138
      %s141 = sphi 0, %s140
      %s155 = sphi 0, %s141
      %s159 = sphi 0, %s159
      %s161 = sphi 0, %s159
      %s162 = sphi 0, %s161
      %s176 = sphi 0, %s162
      %s182 = sphi 0, %s184
      %s185 = sphi 0, %s182
      %s186 = sphi 0, %s185
      %s202 = sphi 0, %s186
    $region4: #{tpu_custom_call.1} parent=1 // loop_header_branch
      %23 = sbr.rel (%p21) target = $region8
    $region5: #{tpu_custom_call.1} parent=1 // loop_body
      %s25 = ssub.s32 %s20, 1
      %s26 = ssub.s32 %s20, 2
      %s27 = sadd.s32 %s20, 1
      %s28 = ssub.s32 %s20, %s27
      %p29 = scmp.eq.s32.totalorder %s28, 0
      %s31 = sadd.s32 %s30, 1
      %s32 = scalar_select %p29, %s30, %s31
      %p35 = pneg %p29
      %p36 = scmp.eq.s32.totalorder %s20, 1
      %p37 = por %p35, %p36
      %p38 = scmp.ne.s32.totalorder %s30, %s33
      %p39 = scmp.eq.s32.totalorder %s20, 0
      %p40 = por %p38, %p39
      %p41 = scmp.ne.s32.totalorder %s30, %s33
      %p42 = scmp.eq.s32.totalorder %s25, 1
      %p43 = por %p41, %p42
      %p44 = scmp.ne.s32.totalorder %s33, %s34
      %p45 = scmp.eq.s32.totalorder %s25, 0
      %p46 = por %p44, %p45
      %p47 = scmp.ne.s32.totalorder %s33, %s34
      %p48 = scmp.eq.s32.totalorder %s26, 1
      %p49 = por %p47, %p48
      %p51 = scmp.ne.s32.totalorder %s34, %s50
      %p52 = scmp.eq.s32.totalorder %s26, 0
      %p53 = por %p51, %p52
      %s55 = sadd.s32 %s54, 1
      %p58 = scmp.eq.s32.totalorder %s20, 1
      %p59 = scmp.ne.s32.totalorder %s54, %s56
      %p60 = scmp.eq.s32.totalorder %s20, 0
      %p61 = por %p59, %p60
      %p62 = scmp.ne.s32.totalorder %s54, %s56
      %p63 = scmp.eq.s32.totalorder %s25, 1
      %p64 = por %p62, %p63
      %p65 = scmp.ne.s32.totalorder %s56, %s57
      %p66 = scmp.eq.s32.totalorder %s25, 0
      %p67 = por %p65, %p66
      %p68 = scmp.ne.s32.totalorder %s56, %s57
      %p69 = scmp.eq.s32.totalorder %s26, 1
      %p70 = por %p68, %p69
      %p72 = scmp.ne.s32.totalorder %s57, %s71
      %p73 = scmp.eq.s32.totalorder %s26, 0
      %p74 = por %p72, %p73
      %s76 = sadd.s32 %s75, 1
      %p79 = scmp.eq.s32.totalorder %s20, 1
      %p80 = scmp.ne.s32.totalorder %s75, %s77
      %p81 = scmp.eq.s32.totalorder %s20, 0
      %p82 = por %p80, %p81
      %p83 = scmp.ne.s32.totalorder %s75, %s77
      %p84 = scmp.eq.s32.totalorder %s25, 1
      %p85 = por %p83, %p84
      %p86 = scmp.ne.s32.totalorder %s77, %s78
      %p87 = scmp.eq.s32.totalorder %s25, 0
      %p88 = por %p86, %p87
      %p89 = scmp.ne.s32.totalorder %s77, %s78
      %p90 = scmp.eq.s32.totalorder %s26, 1
      %p91 = por %p89, %p90
      %p93 = scmp.ne.s32.totalorder %s78, %s92
      %p94 = scmp.eq.s32.totalorder %s26, 0
      %p95 = por %p93, %p94
      %s97 = sadd.s32 %s96, 1
      %p100 = scmp.eq.s32.totalorder %s20, 1
      %p101 = scmp.ne.s32.totalorder %s96, %s98
      %p102 = scmp.eq.s32.totalorder %s20, 0
      %p103 = por %p101, %p102
      %p104 = scmp.ne.s32.totalorder %s96, %s98
      %p105 = scmp.eq.s32.totalorder %s25, 1
      %p106 = por %p104, %p105
      %p107 = scmp.ne.s32.totalorder %s98, %s99
      %p108 = scmp.eq.s32.totalorder %s25, 0
      %p109 = por %p107, %p108
      %p110 = scmp.ne.s32.totalorder %s98, %s99
      %p111 = scmp.eq.s32.totalorder %s26, 1
      %p112 = por %p110, %p111
      %p114 = scmp.ne.s32.totalorder %s99, %s113
      %p115 = scmp.eq.s32.totalorder %s26, 0
      %p116 = por %p114, %p115
      %s118 = sadd.s32 %s117, 1
      %p121 = scmp.eq.s32.totalorder %s20, 1
      %p122 = scmp.ne.s32.totalorder %s117, %s119
      %p123 = scmp.eq.s32.totalorder %s20, 0
      %p124 = por %p122, %p123
      %p125 = scmp.ne.s32.totalorder %s117, %s119
      %p126 = scmp.eq.s32.totalorder %s25, 1
      %p127 = por %p125, %p126
      %p128 = scmp.ne.s32.totalorder %s119, %s120
      %p129 = scmp.eq.s32.totalorder %s25, 0
      %p130 = por %p128, %p129
      %p131 = scmp.ne.s32.totalorder %s119, %s120
      %p132 = scmp.eq.s32.totalorder %s26, 1
      %p133 = por %p131, %p132
      %p135 = scmp.ne.s32.totalorder %s120, %s134
      %p136 = scmp.eq.s32.totalorder %s26, 0
      %p137 = por %p135, %p136
      %s139 = sadd.s32 %s138, 1
      %p142 = scmp.eq.s32.totalorder %s20, 1
      %p143 = scmp.ne.s32.totalorder %s138, %s140
      %p144 = scmp.eq.s32.totalorder %s20, 0
      %p145 = por %p143, %p144
      %p146 = scmp.ne.s32.totalorder %s138, %s140
      %p147 = scmp.eq.s32.totalorder %s25, 1
      %p148 = por %p146, %p147
      %p149 = scmp.ne.s32.totalorder %s140, %s141
      %p150 = scmp.eq.s32.totalorder %s25, 0
      %p151 = por %p149, %p150
      %p152 = scmp.ne.s32.totalorder %s140, %s141
      %p153 = scmp.eq.s32.totalorder %s26, 1
      %p154 = por %p152, %p153
      %p156 = scmp.ne.s32.totalorder %s141, %s155
      %p157 = scmp.eq.s32.totalorder %s26, 0
      %p158 = por %p156, %p157
      %s160 = sadd.s32 %s159, 1
      %p163 = scmp.eq.s32.totalorder %s20, 1
      %p164 = scmp.ne.s32.totalorder %s159, %s161
      %p165 = scmp.eq.s32.totalorder %s20, 0
      %p166 = por %p164, %p165
      %p167 = scmp.ne.s32.totalorder %s159, %s161
      %p168 = scmp.eq.s32.totalorder %s25, 1
      %p169 = por %p167, %p168
      %p170 = scmp.ne.s32.totalorder %s161, %s162
      %p171 = scmp.eq.s32.totalorder %s25, 0
      %p172 = por %p170, %p171
      %p173 = scmp.ne.s32.totalorder %s161, %s162
      %p174 = scmp.eq.s32.totalorder %s26, 1
      %p175 = por %p173, %p174
      %p177 = scmp.ne.s32.totalorder %s162, %s176
      %p178 = scmp.eq.s32.totalorder %s26, 0
      %p179 = por %p177, %p178
      %s180 = ssub.s32 %s20, %s27
      %p181 = scmp.eq.s32.totalorder %s180, 0
      %s183 = sadd.s32 %s182, 1
      %s184 = scalar_select %p181, %s182, %s183
      %p187 = pneg %p181
      %p188 = scmp.eq.s32.totalorder %s20, 1
      %p189 = por %p187, %p188
      %p190 = scmp.ne.s32.totalorder %s182, %s185
      %p191 = scmp.eq.s32.totalorder %s20, 0
      %p192 = por %p190, %p191
      %p193 = scmp.ne.s32.totalorder %s182, %s185
      %p194 = scmp.eq.s32.totalorder %s25, 1
      %p195 = por %p193, %p194
      %p196 = scmp.ne.s32.totalorder %s185, %s186
      %p197 = scmp.eq.s32.totalorder %s25, 0
      %p198 = por %p196, %p197
      %p199 = scmp.ne.s32.totalorder %s185, %s186
      %p200 = scmp.eq.s32.totalorder %s26, 1
      %p201 = por %p199, %p200
      %p203 = scmp.ne.s32.totalorder %s186, %s202
      %p204 = scmp.eq.s32.totalorder %s26, 0
      %p205 = por %p203, %p204
      %p206 = scmp.le.s32.totalorder 1, %s20
      %p207 = scmp.lt.s32.totalorder %s20, 3
      %p208 = pnand %p206, %p207
      %p209 = pneg %p208
      // Predicated region
      $region9: #{tpu_custom_call.1} parent=5 // pred_check
        _
      $region10: #{tpu_custom_call.1} parent=5 // pred_check_branch
        %211 = sbr.rel (%p208) target = $region12
      $region11: #{tpu_custom_call.1} parent=5 // pred_region
        %s212 = ssub.s32 %s20, 1
        // Predicated region
        $region13: #{tpu_custom_call.1} parent=11 // pred_check
          %p213 = pneg %p67
        $region14: #{tpu_custom_call.1} parent=11 // pred_check_branch
          %215 = sbr.rel (%p213) target = $region16
        $region15: #{tpu_custom_call.1} parent=11 // pred_region
          %s217 = ssub.s32 256, 256
          %218 = vsyncadd [#allocation6], %s217
          %s219 = sshll.u32 [#allocation5], 4
          %s220 = int_to_ptr.vmem [resolvable:$true] %s219
          %225 = dma.hbm_to_vmem [thread:$0]  %s1, 256, %s220, [#allocation6], 64, 64, 4
        $region16: #{tpu_custom_call.1} parent=11 // pred_fallthru
          _
        // Predicated region
        $region17: #{tpu_custom_call.1} parent=11 // pred_check
          %p226 = pneg %p88
        $region18: #{tpu_custom_call.1} parent=11 // pred_check_branch
          %228 = sbr.rel (%p226) target = $region20
        $region19: #{tpu_custom_call.1} parent=11 // pred_region
          _
        $region20: #{tpu_custom_call.1} parent=11 // pred_fallthru
          _
        // Predicated region
        $region21: #{tpu_custom_call.1} parent=11 // pred_check
          %p229 = pneg %p109
        $region22: #{tpu_custom_call.1} parent=11 // pred_check_branch
          %231 = sbr.rel (%p229) target = $region24
        $region23: #{tpu_custom_call.1} parent=11 // pred_region
          %s233 = ssub.s32 256, 256
          %234 = vsyncadd [#allocation6], %s233
          %s235 = sshll.u32 [#allocation7], 4
          %s236 = int_to_ptr.vmem [resolvable:$true] %s235
          %241 = dma.hbm_to_vmem [thread:$0]  %s3, 256, %s236, [#allocation6], 64, 64, 4
        $region24: #{tpu_custom_call.1} parent=11 // pred_fallthru
          _
        // Predicated region
        $region25: #{tpu_custom_call.1} parent=11 // pred_check
          %p242 = pneg %p130
        $region26: #{tpu_custom_call.1} parent=11 // pred_check_branch
          %244 = sbr.rel (%p242) target = $region28
        $region27: #{tpu_custom_call.1} parent=11 // pred_region
          _
        $region28: #{tpu_custom_call.1} parent=11 // pred_fallthru
          _
        // Predicated region
        $region29: #{tpu_custom_call.1} parent=11 // pred_check
          %p245 = pneg %p151
        $region30: #{tpu_custom_call.1} parent=11 // pred_check_branch
          %247 = sbr.rel (%p245) target = $region32
        $region31: #{tpu_custom_call.1} parent=11 // pred_region
          _
        $region32: #{tpu_custom_call.1} parent=11 // pred_fallthru
          _
        // Predicated region
        $region33: #{tpu_custom_call.1} parent=11 // pred_check
          %p248 = pneg %p172
        $region34: #{tpu_custom_call.1} parent=11 // pred_check_branch
          %250 = sbr.rel (%p248) target = $region36
        $region35: #{tpu_custom_call.1} parent=11 // pred_region
          _
        $region36: #{tpu_custom_call.1} parent=11 // pred_fallthru
          _
      $region12: #{tpu_custom_call.1} parent=5 // pred_fallthru
        _
      %p251 = scmp.lt.s32.totalorder %s20, 2
      // Predicated region
      $region37: #{tpu_custom_call.1} parent=5 // pred_check
        %p252 = pneg %p251
      $region38: #{tpu_custom_call.1} parent=5 // pred_check_branch
        %254 = sbr.rel (%p252) target = $region40
      $region39: #{tpu_custom_call.1} parent=5 // pred_region
        // Predicated region
        $region41: #{tpu_custom_call.1} parent=39 // pred_check
          %p255 = pneg %p40
        $region42: #{tpu_custom_call.1} parent=39 // pred_check_branch
          %257 = sbr.rel (%p255) target = $region44
        $region43: #{tpu_custom_call.1} parent=39 // pred_region
          %s258 = sand.u32 %s30, 1
          %s259 = scalar_lea.sflag [#allocation3], %s258
          %s260 = sand.u32 %s30, 1
          %s261 = smul.addr %s260, 4
          %s262 = scalar_lea.vmem [#allocation2], %s261
          %s264 = ssub.s32 64, 64
          %265 = vsyncadd %s259, %s264
          %s266 = smul.addr %s20, 64
          %s267 = scalar_lea.hbm %s0, %s266
          %s269 = sshll.u32 %s262, 4
          %s270 = int_to_ptr.vmem [resolvable:$true] %s269
          %272 = dma.hbm_to_vmem [thread:$0]  %s267, 64, %s270, %s259
        $region44: #{tpu_custom_call.1} parent=39 // pred_fallthru
          _
      $region40: #{tpu_custom_call.1} parent=5 // pred_fallthru
        _
      %p273 = scmp.le.s32.totalorder 1, %s20
      %p274 = scmp.lt.s32.totalorder %s20, 3
      %p275 = pnand %p273, %p274
      %p276 = pneg %p275
      // Predicated region
      $region45: #{tpu_custom_call.1} parent=5 // pred_check
        _
      $region46: #{tpu_custom_call.1} parent=5 // pred_check_branch
        %278 = sbr.rel (%p275) target = $region48
      $region47: #{tpu_custom_call.1} parent=5 // pred_region
        %s279 = ssub.s32 %s20, 1
        %s280 = sand.u32 %s33, 1
        %s281 = scalar_lea.sflag [#allocation3], %s280
        %s282 = sand.u32 %s33, 1
        %s283 = smul.addr %s282, 4
        %s284 = scalar_lea.vmem [#allocation2], %s283
        // Predicated region
        $region49: #{tpu_custom_call.1} parent=47 // pred_check
          %p285 = pneg %p46
        $region50: #{tpu_custom_call.1} parent=47 // pred_check_branch
          %287 = sbr.rel (%p285) target = $region52
        $region51: #{tpu_custom_call.1} parent=47 // pred_region
          %288 = dma.done %s281, 64
        $region52: #{tpu_custom_call.1} parent=47 // pred_fallthru
          _
        // Predicated region
        $region53: #{tpu_custom_call.1} parent=47 // pred_check
          %p289 = pneg %p67
        $region54: #{tpu_custom_call.1} parent=47 // pred_check_branch
          %291 = sbr.rel (%p289) target = $region56
        $region55: #{tpu_custom_call.1} parent=47 // pred_region
          %292 = dma.done [#allocation6], 256
        $region56: #{tpu_custom_call.1} parent=47 // pred_fallthru
          _
        // Predicated region
        $region57: #{tpu_custom_call.1} parent=47 // pred_check
          %p293 = pneg %p109
        $region58: #{tpu_custom_call.1} parent=47 // pred_check_branch
          %295 = sbr.rel (%p293) target = $region60
        $region59: #{tpu_custom_call.1} parent=47 // pred_region
          %296 = dma.done [#allocation6], 256
        $region60: #{tpu_custom_call.1} parent=47 // pred_fallthru
          _
        %s297 = sand.u32 %s33, 1
        %s298 = scalar_lea.sflag [#allocation3], %s297
        %s299 = sand.u32 %s33, 1
        %s300 = smul.addr %s299, 4
        %s301 = scalar_lea.vmem [#allocation2], %s300
        %p302 = pneg %p46
        %p303 = pneg %p43
        %p304 = pneg %p67
        %p305 = pneg %p64
        %p306 = pneg %p88
        %p307 = pneg %p85
        %p308 = pneg %p109
        %p309 = pneg %p106
        %p310 = pneg %p130
        %p311 = pneg %p127
        %p312 = pneg %p151
        %p313 = pneg %p148
        %p314 = pneg %p172
        %p315 = pneg %p169
        %p316 = pneg %p198
        %p317 = pneg %p195
        %s318 = sand.u32 %s185, 1
        %s319 = scalar_lea.sflag [#allocation4], %s318
        %s320 = sand.u32 %s185, 1
        %s321 = smul.addr %s320, 4
        %s322 = scalar_lea.vmem [#allocation8], %s321
        %v324 = vld [vmem:[%s284] sm:$0xf]
        %v325 = vld [vmem:[#allocation5] sm:$0xf]
        %v326 = vld [vmem:[#allocation5 + $0x4] sm:$0xf]
        %v327 = vld [vmem:[#allocation5 + $0x8] sm:$0xf]
        %v328 = vld [vmem:[#allocation5 + $0xc] sm:$0xf]
        %v329 = vld [vmem:[%s2] sm:$0x1]
        %v331 = vlaneseq
        %v332 = vshrl.u32 %v331, 7
        %v333 = vsub.s32 0, %v332
        %v334 = vrot.slane %v329, %v333
        %v340 = vunpack.c.l.b16 %v325
        %v341 = vunpack.c.l.b16 %v326
        %v342 = vunpack.c.l.b16 %v327
        %v343 = vunpack.c.l.b16 %v328
        %v344 = vpack.c.b16 %v341, %v340
        %v345 = vpack.c.b16 %v343, %v342
        %vm348 = vcmask 261120
        %v350 = vsel %vm348, %v324, 0
        %352 = vmatprep.subr.bf16.mxu0 0
        %353 = vmatpush1.bf16.msra.mxu0 %v344
        %354 = vmatprep.subr.bf16.mxu0 0
        %355 = vmatpush1.bf16.msra.mxu0 %v345
        %356 = vmatprep.subr.bf16.mxu0 0
        %357 = vmatpush1.bf16.msra.mxu0 0
        %358 = vmatprep.subr.bf16.mxu0 0
        %359 = vmatpush1.bf16.msra.mxu0 0
        %360 = vmatprep.subr.bf16.mxu0 0
        %361 = vmatpush1.bf16.msra.mxu0 0
        %362 = vmatprep.subr.bf16.mxu0 0
        %363 = vmatpush1.bf16.msra.mxu0 0
        %364 = vmatprep.subr.bf16.mxu0 0
        %365 = vmatpush1.bf16.msra.mxu0 0
        %366 = vmatprep.subr.bf16.mxu0 0
        %367 = vmatpush1.bf16.msra.mxu0 0
        %368 = vmatprep.subr.bf16.mxu0 0
        %369 = vmatpush1.bf16.msra.mxu0 0
        %370 = vmatprep.subr.bf16.mxu0 0
        %371 = vmatpush1.bf16.msra.mxu0 0
        %372 = vmatprep.subr.bf16.mxu0 0
        %373 = vmatpush1.bf16.msra.mxu0 0
        %374 = vmatprep.subr.bf16.mxu0 0
        %375 = vmatpush1.bf16.msra.mxu0 0
        %376 = vmatprep.subr.bf16.mxu0 0
        %377 = vmatpush1.bf16.msra.mxu0 0
        %378 = vmatprep.subr.bf16.mxu0 0
        %379 = vmatpush1.bf16.msra.mxu0 0
        %380 = vmatprep.subr.bf16.mxu0 0
        %381 = vmatpush1.bf16.msra.mxu0 0
        %382 = vmatprep.subr.bf16.mxu0 0
        %383 = vmatpush1.bf16.msra.mxu0 0
        %384 = vmatprep.mubr.bf16.mxu0 0
        %385 = vmatmul.mubr.bf16.gmra.mrb[0].mxu0 %v350
        %v386 = vpop.f32.mrb[0].mxu0
        %v387 = vadd.f32 %v334, %v386
        %v388 = vpop.f32.mrb[0].mxu0
        %v389 = vpop.f32.mrb[0].mxu0
        %v390 = vpop.f32.mrb[0].mxu0
        %391 = vdwg.mxu0
        %393 = vrot.lane.b32.xlu0 %v387, 112
        %v394 = vpop.permute.xlu0 %393
        %v396 = vcombine.high %v387, 0.0
        %v398 = vunpack.c.l.s4 1983009808
        %v399 = vunpack.c.0.s8 %v398
        %v400 = vlaneseq
        %v401 = vshrl.u32 %v400, 7
        %v402 = vsub.s32 %v399, %v401
        %v403 = vrot.slane %v387, %v402
        %v405 = vunpack.c.l.s4 1983009808
        %v406 = vunpack.c.0.s8 %v405
        %v407 = vlaneseq
        %v408 = vshrl.u32 %v407, 7
        %v409 = vsub.s32 %v406, %v408
        %v410 = vrot.slane %v396, %v409
        %v411 = vcombine.high %v394, 0.0
        %v413 = vunpack.c.l.s4 1983009808
        %v414 = vunpack.c.0.s8 %v413
        %v415 = vlaneseq
        %v416 = vshrl.u32 %v415, 7
        %v417 = vsub.s32 %v414, %v416
        %v418 = vrot.slane %v394, %v417
        %v420 = vunpack.c.l.s4 1983009808
        %v421 = vunpack.c.0.s8 %v420
        %v422 = vlaneseq
        %v423 = vshrl.u32 %v422, 7
        %v424 = vsub.s32 %v421, %v423
        %v425 = vrot.slane %v411, %v424
        %v426 = vcombine.low %v403, %v418
        %v427 = vcombine.high %v403, %v418
        %v429 = vunpack.c.l.s4 1934713408
        %v430 = vunpack.c.0.s8 %v429
        %v431 = vlaneseq
        %v432 = vshrl.u32 %v431, 7
        %v433 = vsub.s32 %v430, %v432
        %v434 = vrot.slane %v426, %v433
        %v436 = vunpack.c.l.s4 1934713408
        %v437 = vunpack.c.0.s8 %v436
        %v438 = vlaneseq
        %v439 = vshrl.u32 %v438, 7
        %v440 = vsub.s32 %v437, %v439
        %v441 = vrot.slane %v427, %v440
        %v442 = vcombine.low %v410, %v425
        %v443 = vcombine.high %v410, %v425
        %v445 = vunpack.c.l.s4 1934713408
        %v446 = vunpack.c.0.s8 %v445
        %v447 = vlaneseq
        %v448 = vshrl.u32 %v447, 7
        %v449 = vsub.s32 %v446, %v448
        %v450 = vrot.slane %v442, %v449
        %v452 = vunpack.c.l.s4 1934713408
        %v453 = vunpack.c.0.s8 %v452
        %v454 = vlaneseq
        %v455 = vshrl.u32 %v454, 7
        %v456 = vsub.s32 %v453, %v455
        %v457 = vrot.slane %v443, %v456
        %v458 = vcombine.high %v434, 0.0
        %v459 = vcombine.high %v441, 0.0
        %v460 = vcombine.high %v450, 0.0
        %v461 = vcombine.high %v457, 0.0
        %v462 = vcombine.low %v434, %v441
        %v464 = vunpack.c.l.s4 1983009808
        %v465 = vunpack.c.0.s8 %v464
        %v466 = vlaneseq
        %v467 = vshrl.u32 %v466, 7
        %v468 = vsub.s32 %v465, %v467
        %v469 = vrot.slane %v462, %v468
        %v470 = vcombine.low %v458, %v459
        %v472 = vunpack.c.l.s4 1983009808
        %v473 = vunpack.c.0.s8 %v472
        %v474 = vlaneseq
        %v475 = vshrl.u32 %v474, 7
        %v476 = vsub.s32 %v473, %v475
        %v477 = vrot.slane %v470, %v476
        %v478 = vcombine.low %v450, %v457
        %v480 = vunpack.c.l.s4 1983009808
        %v481 = vunpack.c.0.s8 %v480
        %v482 = vlaneseq
        %v483 = vshrl.u32 %v482, 7
        %v484 = vsub.s32 %v481, %v483
        %v485 = vrot.slane %v478, %v484
        %v486 = vcombine.low %v460, %v461
        %v488 = vunpack.c.l.s4 1983009808
        %v489 = vunpack.c.0.s8 %v488
        %v490 = vlaneseq
        %v491 = vshrl.u32 %v490, 7
        %v492 = vsub.s32 %v489, %v491
        %v493 = vrot.slane %v486, %v492
        %v494 = vcombine.low %v469, %v477
        %v496 = vunpack.c.l.s4 1934713408
        %v497 = vunpack.c.0.s8 %v496
        %v498 = vlaneseq
        %v499 = vshrl.u32 %v498, 7
        %v500 = vsub.s32 %v497, %v499
        %v501 = vrot.slane %v494, %v500
        %v502 = vcombine.low %v485, %v493
        %v504 = vunpack.c.l.s4 1934713408
        %v505 = vunpack.c.0.s8 %v504
        %v506 = vlaneseq
        %v507 = vshrl.u32 %v506, 7
        %v508 = vsub.s32 %v505, %v507
        %v509 = vrot.slane %v502, %v508
        %v510 = vcombine.low %v501, %v509
        %v511 = vcombine.high %v501, %v509
        %v512 = vpack.c.bf16 %v510, %v510
        %v513 = vpack.c.bf16 %v511, %v511
        %514 = vrot.lane.b32.xlu0 %v387, 96
        %v515 = vpop.permute.xlu0 %514
        %516 = vrot.lane.b32.xlu0 %v394, 96
        %v517 = vpop.permute.xlu0 %516
        %v520 = vcombine.high %v515, 0.0
        %v522 = vunpack.c.l.s4 1983009808
        %v523 = vunpack.c.0.s8 %v522
        %v524 = vlaneseq
        %v525 = vshrl.u32 %v524, 7
        %v526 = vsub.s32 %v523, %v525
        %v527 = vrot.slane %v515, %v526
        %v529 = vunpack.c.l.s4 1983009808
        %v530 = vunpack.c.0.s8 %v529
        %v531 = vlaneseq
        %v532 = vshrl.u32 %v531, 7
        %v533 = vsub.s32 %v530, %v532
        %v534 = vrot.slane %v520, %v533
        %v535 = vcombine.high %v517, 0.0
        %v537 = vunpack.c.l.s4 1983009808
        %v538 = vunpack.c.0.s8 %v537
        %v539 = vlaneseq
        %v540 = vshrl.u32 %v539, 7
        %v541 = vsub.s32 %v538, %v540
        %v542 = vrot.slane %v517, %v541
        %v544 = vunpack.c.l.s4 1983009808
        %v545 = vunpack.c.0.s8 %v544
        %v546 = vlaneseq
        %v547 = vshrl.u32 %v546, 7
        %v548 = vsub.s32 %v545, %v547
        %v549 = vrot.slane %v535, %v548
        %v550 = vcombine.low %v527, %v542
        %v551 = vcombine.high %v527, %v542
        %v553 = vunpack.c.l.s4 1934713408
        %v554 = vunpack.c.0.s8 %v553
        %v555 = vlaneseq
        %v556 = vshrl.u32 %v555, 7
        %v557 = vsub.s32 %v554, %v556
        %v558 = vrot.slane %v550, %v557
        %v560 = vunpack.c.l.s4 1934713408
        %v561 = vunpack.c.0.s8 %v560
        %v562 = vlaneseq
        %v563 = vshrl.u32 %v562, 7
        %v564 = vsub.s32 %v561, %v563
        %v565 = vrot.slane %v551, %v564
        %v566 = vcombine.low %v534, %v549
        %v567 = vcombine.high %v534, %v549
        %v569 = vunpack.c.l.s4 1934713408
        %v570 = vunpack.c.0.s8 %v569
        %v571 = vlaneseq
        %v572 = vshrl.u32 %v571, 7
        %v573 = vsub.s32 %v570, %v572
        %v574 = vrot.slane %v566, %v573
        %v576 = vunpack.c.l.s4 1934713408
        %v577 = vunpack.c.0.s8 %v576
        %v578 = vlaneseq
        %v579 = vshrl.u32 %v578, 7
        %v580 = vsub.s32 %v577, %v579
        %v581 = vrot.slane %v567, %v580
        %v582 = vcombine.high %v558, 0.0
        %v583 = vcombine.high %v565, 0.0
        %v584 = vcombine.high %v574, 0.0
        %v585 = vcombine.high %v581, 0.0
        %v586 = vcombine.low %v558, %v565
        %v588 = vunpack.c.l.s4 1983009808
        %v589 = vunpack.c.0.s8 %v588
        %v590 = vlaneseq
        %v591 = vshrl.u32 %v590, 7
        %v592 = vsub.s32 %v589, %v591
        %v593 = vrot.slane %v586, %v592
        %v594 = vcombine.low %v582, %v583
        %v596 = vunpack.c.l.s4 1983009808
        %v597 = vunpack.c.0.s8 %v596
        %v598 = vlaneseq
        %v599 = vshrl.u32 %v598, 7
        %v600 = vsub.s32 %v597, %v599
        %v601 = vrot.slane %v594, %v600
        %v602 = vcombine.low %v574, %v581
        %v604 = vunpack.c.l.s4 1983009808
        %v605 = vunpack.c.0.s8 %v604
        %v606 = vlaneseq
        %v607 = vshrl.u32 %v606, 7
        %v608 = vsub.s32 %v605, %v607
        %v609 = vrot.slane %v602, %v608
        %v610 = vcombine.low %v584, %v585
        %v612 = vunpack.c.l.s4 1983009808
        %v613 = vunpack.c.0.s8 %v612
        %v614 = vlaneseq
        %v615 = vshrl.u32 %v614, 7
        %v616 = vsub.s32 %v613, %v615
        %v617 = vrot.slane %v610, %v616
        %v618 = vcombine.low %v593, %v601
        %v620 = vunpack.c.l.s4 1934713408
        %v621 = vunpack.c.0.s8 %v620
        %v622 = vlaneseq
        %v623 = vshrl.u32 %v622, 7
        %v624 = vsub.s32 %v621, %v623
        %v625 = vrot.slane %v618, %v624
        %v626 = vcombine.low %v609, %v617
        %v628 = vunpack.c.l.s4 1934713408
        %v629 = vunpack.c.0.s8 %v628
        %v630 = vlaneseq
        %v631 = vshrl.u32 %v630, 7
        %v632 = vsub.s32 %v629, %v631
        %v633 = vrot.slane %v626, %v632
        %v634 = vcombine.low %v625, %v633
        %v635 = vcombine.high %v625, %v633
        %v636 = vpack.c.bf16 %v634, %v634
        %v637 = vpack.c.bf16 %v635, %v635
        %638 = vrot.lane.b32.xlu0 %v387, 64
        %v639 = vpop.permute.xlu0 %638
        %640 = vrot.lane.b32.xlu0 %v394, 64
        %v641 = vpop.permute.xlu0 %640
        %v644 = vcombine.high %v639, 0.0
        %v646 = vunpack.c.l.s4 1983009808
        %v647 = vunpack.c.0.s8 %v646
        %v648 = vlaneseq
        %v649 = vshrl.u32 %v648, 7
        %v650 = vsub.s32 %v647, %v649
        %v651 = vrot.slane %v639, %v650
        %v653 = vunpack.c.l.s4 1983009808
        %v654 = vunpack.c.0.s8 %v653
        %v655 = vlaneseq
        %v656 = vshrl.u32 %v655, 7
        %v657 = vsub.s32 %v654, %v656
        %v658 = vrot.slane %v644, %v657
        %v659 = vcombine.high %v641, 0.0
        %v661 = vunpack.c.l.s4 1983009808
        %v662 = vunpack.c.0.s8 %v661
        %v663 = vlaneseq
        %v664 = vshrl.u32 %v663, 7
        %v665 = vsub.s32 %v662, %v664
        %v666 = vrot.slane %v641, %v665
        %v668 = vunpack.c.l.s4 1983009808
        %v669 = vunpack.c.0.s8 %v668
        %v670 = vlaneseq
        %v671 = vshrl.u32 %v670, 7
        %v672 = vsub.s32 %v669, %v671
        %v673 = vrot.slane %v659, %v672
        %v674 = vcombine.low %v651, %v666
        %v675 = vcombine.high %v651, %v666
        %v677 = vunpack.c.l.s4 1934713408
        %v678 = vunpack.c.0.s8 %v677
        %v679 = vlaneseq
        %v680 = vshrl.u32 %v679, 7
        %v681 = vsub.s32 %v678, %v680
        %v682 = vrot.slane %v674, %v681
        %v684 = vunpack.c.l.s4 1934713408
        %v685 = vunpack.c.0.s8 %v684
        %v686 = vlaneseq
        %v687 = vshrl.u32 %v686, 7
        %v688 = vsub.s32 %v685, %v687
        %v689 = vrot.slane %v675, %v688
        %v690 = vcombine.low %v658, %v673
        %v691 = vcombine.high %v658, %v673
        %v693 = vunpack.c.l.s4 1934713408
        %v694 = vunpack.c.0.s8 %v693
        %v695 = vlaneseq
        %v696 = vshrl.u32 %v695, 7
        %v697 = vsub.s32 %v694, %v696
        %v698 = vrot.slane %v690, %v697
        %v700 = vunpack.c.l.s4 1934713408
        %v701 = vunpack.c.0.s8 %v700
        %v702 = vlaneseq
        %v703 = vshrl.u32 %v702, 7
        %v704 = vsub.s32 %v701, %v703
        %v705 = vrot.slane %v691, %v704
        %v706 = vcombine.high %v682, 0.0
        %v707 = vcombine.high %v689, 0.0
        %v708 = vcombine.high %v698, 0.0
        %v709 = vcombine.high %v705, 0.0
        %v710 = vcombine.low %v682, %v689
        %v712 = vunpack.c.l.s4 1983009808
        %v713 = vunpack.c.0.s8 %v712
        %v714 = vlaneseq
        %v715 = vshrl.u32 %v714, 7
        %v716 = vsub.s32 %v713, %v715
        %v717 = vrot.slane %v710, %v716
        %v718 = vcombine.low %v706, %v707
        %v720 = vunpack.c.l.s4 1983009808
        %v721 = vunpack.c.0.s8 %v720
        %v722 = vlaneseq
        %v723 = vshrl.u32 %v722, 7
        %v724 = vsub.s32 %v721, %v723
        %v725 = vrot.slane %v718, %v724
        %v726 = vcombine.low %v698, %v705
        %v728 = vunpack.c.l.s4 1983009808
        %v729 = vunpack.c.0.s8 %v728
        %v730 = vlaneseq
        %v731 = vshrl.u32 %v730, 7
        %v732 = vsub.s32 %v729, %v731
        %v733 = vrot.slane %v726, %v732
        %v734 = vcombine.low %v708, %v709
        %v736 = vunpack.c.l.s4 1983009808
        %v737 = vunpack.c.0.s8 %v736
        %v738 = vlaneseq
        %v739 = vshrl.u32 %v738, 7
        %v740 = vsub.s32 %v737, %v739
        %v741 = vrot.slane %v734, %v740
        %v742 = vcombine.low %v717, %v725
        %v744 = vunpack.c.l.s4 1934713408
        %v745 = vunpack.c.0.s8 %v744
        %v746 = vlaneseq
        %v747 = vshrl.u32 %v746, 7
        %v748 = vsub.s32 %v745, %v747
        %v749 = vrot.slane %v742, %v748
        %v750 = vcombine.low %v733, %v741
        %v752 = vunpack.c.l.s4 1934713408
        %v753 = vunpack.c.0.s8 %v752
        %v754 = vlaneseq
        %v755 = vshrl.u32 %v754, 7
        %v756 = vsub.s32 %v753, %v755
        %v757 = vrot.slane %v750, %v756
        %v758 = vcombine.low %v749, %v757
        %v759 = vcombine.high %v749, %v757
        %v760 = vpack.c.bf16 %v758, %v758
        %v761 = vpack.c.bf16 %v759, %v759
        %vm762 = vcmask 130048
        %v764 = vsel %vm762, %v512, 0
        %v767 = vsel %vm762, %v636, 0
        %769 = vmatprep.subr.bf16.mxu0 0
        %770 = vmatpush1.bf16.xpose.msra.mxu0 %v767
        %771 = vmatprep.subr.bf16.mxu0 0
        %772 = vmatpush1.bf16.xpose.msra.mxu0 0
        %773 = vmatprep.subr.bf16.mxu0 0
        %774 = vmatpush1.bf16.xpose.msra.mxu0 0
        %775 = vmatprep.subr.bf16.mxu0 0
        %776 = vmatpush1.bf16.xpose.msra.mxu0 0
        %777 = vmatprep.subr.bf16.mxu0 0
        %778 = vmatpush1.bf16.xpose.msra.mxu0 0
        %779 = vmatprep.subr.bf16.mxu0 0
        %780 = vmatpush1.bf16.xpose.msra.mxu0 0
        %781 = vmatprep.subr.bf16.mxu0 0
        %782 = vmatpush1.bf16.xpose.msra.mxu0 0
        %783 = vmatprep.subr.bf16.mxu0 0
        %784 = vmatpush1.bf16.xpose.msra.mxu0 0
        %785 = vmatprep.subr.bf16.mxu0 0
        %786 = vmatpush1.bf16.xpose.msra.mxu0 0
        %787 = vmatprep.subr.bf16.mxu0 0
        %788 = vmatpush1.bf16.xpose.msra.mxu0 0
        %789 = vmatprep.subr.bf16.mxu0 0
        %790 = vmatpush1.bf16.xpose.msra.mxu0 0
        %791 = vmatprep.subr.bf16.mxu0 0
        %792 = vmatpush1.bf16.xpose.msra.mxu0 0
        %793 = vmatprep.subr.bf16.mxu0 0
        %794 = vmatpush1.bf16.xpose.msra.mxu0 0
        %795 = vmatprep.subr.bf16.mxu0 0
        %796 = vmatpush1.bf16.xpose.msra.mxu0 0
        %797 = vmatprep.subr.bf16.mxu0 0
        %798 = vmatpush1.bf16.xpose.msra.mxu0 0
        %799 = vmatprep.subr.bf16.mxu0 0
        %800 = vmatpush1.bf16.xpose.msra.mxu0 0
        %801 = vmatprep.mubr.bf16.mxu0 0
        %802 = vmatmul.mubr.bf16.gmra.mrb[0].mxu0 %v764
        %v803 = vpop.f32.mrb[0].mxu0
        %v804 = vadd.f32 0.0, %v803
        %v805 = vpop.f32.mrb[0].mxu0
        %v806 = vpop.f32.mrb[0].mxu0
        %v807 = vpop.f32.mrb[0].mxu0
        %808 = vdwg.mxu0
        %v810 = vsel %vm762, %v513, 0
        %v813 = vsel %vm762, %v637, 0
        %815 = vmatprep.subr.bf16.mxu0 0
        %816 = vmatpush1.bf16.xpose.msra.mxu0 %v813
        %817 = vmatprep.subr.bf16.mxu0 0
        %818 = vmatpush1.bf16.xpose.msra.mxu0 0
        %819 = vmatprep.subr.bf16.mxu0 0
        %820 = vmatpush1.bf16.xpose.msra.mxu0 0
        %821 = vmatprep.subr.bf16.mxu0 0
        %822 = vmatpush1.bf16.xpose.msra.mxu0 0
        %823 = vmatprep.subr.bf16.mxu0 0
        %824 = vmatpush1.bf16.xpose.msra.mxu0 0
        %825 = vmatprep.subr.bf16.mxu0 0
        %826 = vmatpush1.bf16.xpose.msra.mxu0 0
        %827 = vmatprep.subr.bf16.mxu0 0
        %828 = vmatpush1.bf16.xpose.msra.mxu0 0
        %829 = vmatprep.subr.bf16.mxu0 0
        %830 = vmatpush1.bf16.xpose.msra.mxu0 0
        %831 = vmatprep.subr.bf16.mxu0 0
        %832 = vmatpush1.bf16.xpose.msra.mxu0 0
        %833 = vmatprep.subr.bf16.mxu0 0
        %834 = vmatpush1.bf16.xpose.msra.mxu0 0
        %835 = vmatprep.subr.bf16.mxu0 0
        %836 = vmatpush1.bf16.xpose.msra.mxu0 0
        %837 = vmatprep.subr.bf16.mxu0 0
        %838 = vmatpush1.bf16.xpose.msra.mxu0 0
        %839 = vmatprep.subr.bf16.mxu0 0
        %840 = vmatpush1.bf16.xpose.msra.mxu0 0
        %841 = vmatprep.subr.bf16.mxu0 0
        %842 = vmatpush1.bf16.xpose.msra.mxu0 0
        %843 = vmatprep.subr.bf16.mxu0 0
        %844 = vmatpush1.bf16.xpose.msra.mxu0 0
        %845 = vmatprep.subr.bf16.mxu0 0
        %846 = vmatpush1.bf16.xpose.msra.mxu0 0
        %847 = vmatprep.mubr.bf16.mxu0 0
        %848 = vmatmul.mubr.bf16.gmra.mrb[0].mxu0 %v810
        %v849 = vpop.f32.mrb[0].mxu0
        %v850 = vadd.f32 0.0, %v849
        %v851 = vpop.f32.mrb[0].mxu0
        %v852 = vpop.f32.mrb[0].mxu0
        %v853 = vpop.f32.mrb[0].mxu0
        %854 = vdwg.mxu0
        %vm855 = vcmask 64512
        %v856 = vsel %vm855, %v804, -inf
        %857 = vmax.xlane.f32.xlu0 %v856
        %v858 = vpop.xlane.xlu0 %857
        %v859 = vsel %vm855, %v850, -inf
        %860 = vmax.xlane.f32.xlu0 %v859
        %v861 = vpop.xlane.xlu0 %860
        %v862 = vsub.f32 %v804, %v858
        %v863 = vsub.f32 %v850, %v861
        %v864 = vmul.f32 %v862, 1.442695
        %v865 = vpow.pop %v864
        %v866 = vmul.f32 %v863, 1.442695
        %v867 = vpow.pop %v866
        %v868 = vsel %vm855, %v865, 0.0
        %869 = vadd.xlane.f32.xlu0 %v868
        %v870 = vpop.xlane.xlu0 %869
        %v871 = vsel %vm855, %v867, 0.0
        %872 = vadd.xlane.f32.xlu0 %v871
        %v873 = vpop.xlane.xlu0 %872
        %v874 = vrcp.pop %v870
        %v875 = vrcp.pop %v873
        %v876 = vmul.f32 %v865, %v874
        %v877 = vmul.f32 %v867, %v875
        %v878 = vpack.c.bf16 %v876, %v876
        %v879 = vpack.c.bf16 %v877, %v877
        %v881 = vsel %vm855, %v878, 0
        %vm883 = vcmask 1043456
        %v885 = vsel %vm883, %v760, 0
        %887 = vmatprep.subr.bf16.mxu0 0
        %888 = vmatpush1.bf16.msra.mxu0 %v885
        %889 = vmatprep.subr.bf16.mxu0 0
        %890 = vmatpush1.bf16.msra.mxu0 0
        %891 = vmatprep.subr.bf16.mxu0 0
        %892 = vmatpush1.bf16.msra.mxu0 0
        %893 = vmatprep.subr.bf16.mxu0 0
        %894 = vmatpush1.bf16.msra.mxu0 0
        %895 = vmatprep.subr.bf16.mxu0 0
        %896 = vmatpush1.bf16.msra.mxu0 0
        %897 = vmatprep.subr.bf16.mxu0 0
        %898 = vmatpush1.bf16.msra.mxu0 0
        %899 = vmatprep.subr.bf16.mxu0 0
        %900 = vmatpush1.bf16.msra.mxu0 0
        %901 = vmatprep.subr.bf16.mxu0 0
        %902 = vmatpush1.bf16.msra.mxu0 0
        %903 = vmatprep.subr.bf16.mxu0 0
        %904 = vmatpush1.bf16.msra.mxu0 0
        %905 = vmatprep.subr.bf16.mxu0 0
        %906 = vmatpush1.bf16.msra.mxu0 0
        %907 = vmatprep.subr.bf16.mxu0 0
        %908 = vmatpush1.bf16.msra.mxu0 0
        %909 = vmatprep.subr.bf16.mxu0 0
        %910 = vmatpush1.bf16.msra.mxu0 0
        %911 = vmatprep.subr.bf16.mxu0 0
        %912 = vmatpush1.bf16.msra.mxu0 0
        %913 = vmatprep.subr.bf16.mxu0 0
        %914 = vmatpush1.bf16.msra.mxu0 0
        %915 = vmatprep.subr.bf16.mxu0 0
        %916 = vmatpush1.bf16.msra.mxu0 0
        %917 = vmatprep.subr.bf16.mxu0 0
        %918 = vmatpush1.bf16.msra.mxu0 0
        %919 = vmatprep.mubr.bf16.mxu0 0
        %920 = vmatmul.mubr.bf16.gmra.mrb[0].mxu0 %v881
        %v921 = vpop.f32.mrb[0].mxu0
        %v922 = vadd.f32 0.0, %v921
        %v923 = vpop.f32.mrb[0].mxu0
        %v924 = vpop.f32.mrb[0].mxu0
        %v925 = vpop.f32.mrb[0].mxu0
        %926 = vdwg.mxu0
        %v928 = vsel %vm855, %v879, 0
        %v931 = vsel %vm883, %v761, 0
        %933 = vmatprep.subr.bf16.mxu0 0
        %934 = vmatpush1.bf16.msra.mxu0 %v931
        %935 = vmatprep.subr.bf16.mxu0 0
        %936 = vmatpush1.bf16.msra.mxu0 0
        %937 = vmatprep.subr.bf16.mxu0 0
        %938 = vmatpush1.bf16.msra.mxu0 0
        %939 = vmatprep.subr.bf16.mxu0 0
        %940 = vmatpush1.bf16.msra.mxu0 0
        %941 = vmatprep.subr.bf16.mxu0 0
        %942 = vmatpush1.bf16.msra.mxu0 0
        %943 = vmatprep.subr.bf16.mxu0 0
        %944 = vmatpush1.bf16.msra.mxu0 0
        %945 = vmatprep.subr.bf16.mxu0 0
        %946 = vmatpush1.bf16.msra.mxu0 0
        %947 = vmatprep.subr.bf16.mxu0 0
        %948 = vmatpush1.bf16.msra.mxu0 0
        %949 = vmatprep.subr.bf16.mxu0 0
        %950 = vmatpush1.bf16.msra.mxu0 0
        %951 = vmatprep.subr.bf16.mxu0 0
        %952 = vmatpush1.bf16.msra.mxu0 0
        %953 = vmatprep.subr.bf16.mxu0 0
        %954 = vmatpush1.bf16.msra.mxu0 0
        %955 = vmatprep.subr.bf16.mxu0 0
        %956 = vmatpush1.bf16.msra.mxu0 0
        %957 = vmatprep.subr.bf16.mxu0 0
        %958 = vmatpush1.bf16.msra.mxu0 0
        %959 = vmatprep.subr.bf16.mxu0 0
        %960 = vmatpush1.bf16.msra.mxu0 0
        %961 = vmatprep.subr.bf16.mxu0 0
        %962 = vmatpush1.bf16.msra.mxu0 0
        %963 = vmatprep.subr.bf16.mxu0 0
        %964 = vmatpush1.bf16.msra.mxu0 0
        %965 = vmatprep.mubr.bf16.mxu0 0
        %966 = vmatmul.mubr.bf16.gmra.mrb[0].mxu0 %v928
        %v967 = vpop.f32.mrb[0].mxu0
        %v968 = vadd.f32 0.0, %v967
        %v969 = vpop.f32.mrb[0].mxu0
        %v970 = vpop.f32.mrb[0].mxu0
        %v971 = vpop.f32.mrb[0].mxu0
        %972 = vdwg.mxu0
        %v973 = vcombine.high %v922, 0.0
        %v975 = vunpack.c.l.s4 1983009808
        %v976 = vunpack.c.0.s8 %v975
        %v977 = vlaneseq
        %v978 = vshrl.u32 %v977, 7
        %v979 = vsub.s32 %v976, %v978
        %v980 = vrot.slane %v922, %v979
        %v982 = vunpack.c.l.s4 1983009808
        %v983 = vunpack.c.0.s8 %v982
        %v984 = vlaneseq
        %v985 = vshrl.u32 %v984, 7
        %v986 = vsub.s32 %v983, %v985
        %v987 = vrot.slane %v973, %v986
        %v988 = vcombine.high %v968, 0.0
        %v990 = vunpack.c.l.s4 1983009808
        %v991 = vunpack.c.0.s8 %v990
        %v992 = vlaneseq
        %v993 = vshrl.u32 %v992, 7
        %v994 = vsub.s32 %v991, %v993
        %v995 = vrot.slane %v968, %v994
        %v997 = vunpack.c.l.s4 1983009808
        %v998 = vunpack.c.0.s8 %v997
        %v999 = vlaneseq
        %v1000 = vshrl.u32 %v999, 7
        %v1001 = vsub.s32 %v998, %v1000
        %v1002 = vrot.slane %v988, %v1001
        %v1003 = vcombine.low %v980, %v995
        %v1004 = vcombine.high %v980, %v995
        %v1006 = vunpack.c.l.s4 1934713408
        %v1007 = vunpack.c.0.s8 %v1006
        %v1008 = vlaneseq
        %v1009 = vshrl.u32 %v1008, 7
        %v1010 = vsub.s32 %v1007, %v1009
        %v1011 = vrot.slane %v1003, %v1010
        %v1013 = vunpack.c.l.s4 1934713408
        %v1014 = vunpack.c.0.s8 %v1013
        %v1015 = vlaneseq
        %v1016 = vshrl.u32 %v1015, 7
        %v1017 = vsub.s32 %v1014, %v1016
        %v1018 = vrot.slane %v1004, %v1017
        %v1019 = vcombine.low %v987, %v1002
        %v1020 = vcombine.high %v987, %v1002
        %v1022 = vunpack.c.l.s4 1934713408
        %v1023 = vunpack.c.0.s8 %v1022
        %v1024 = vlaneseq
        %v1025 = vshrl.u32 %v1024, 7
        %v1026 = vsub.s32 %v1023, %v1025
        %v1027 = vrot.slane %v1019, %v1026
        %v1029 = vunpack.c.l.s4 1934713408
        %v1030 = vunpack.c.0.s8 %v1029
        %v1031 = vlaneseq
        %v1032 = vshrl.u32 %v1031, 7
        %v1033 = vsub.s32 %v1030, %v1032
        %v1034 = vrot.slane %v1020, %v1033
        %v1035 = vcombine.high %v1011, 0.0
        %v1036 = vcombine.high %v1018, 0.0
        %v1037 = vcombine.high %v1027, 0.0
        %v1038 = vcombine.high %v1034, 0.0
        %v1039 = vcombine.low %v1011, %v1018
        %v1041 = vunpack.c.l.s4 1983009808
        %v1042 = vunpack.c.0.s8 %v1041
        %v1043 = vlaneseq
        %v1044 = vshrl.u32 %v1043, 7
        %v1045 = vsub.s32 %v1042, %v1044
        %v1046 = vrot.slane %v1039, %v1045
        %v1047 = vcombine.low %v1035, %v1036
        %v1049 = vunpack.c.l.s4 1983009808
        %v1050 = vunpack.c.0.s8 %v1049
        %v1051 = vlaneseq
        %v1052 = vshrl.u32 %v1051, 7
        %v1053 = vsub.s32 %v1050, %v1052
        %v1054 = vrot.slane %v1047, %v1053
        %v1055 = vcombine.low %v1027, %v1034
        %v1057 = vunpack.c.l.s4 1983009808
        %v1058 = vunpack.c.0.s8 %v1057
        %v1059 = vlaneseq
        %v1060 = vshrl.u32 %v1059, 7
        %v1061 = vsub.s32 %v1058, %v1060
        %v1062 = vrot.slane %v1055, %v1061
        %v1063 = vcombine.low %v1037, %v1038
        %v1065 = vunpack.c.l.s4 1983009808
        %v1066 = vunpack.c.0.s8 %v1065
        %v1067 = vlaneseq
        %v1068 = vshrl.u32 %v1067, 7
        %v1069 = vsub.s32 %v1066, %v1068
        %v1070 = vrot.slane %v1063, %v1069
        %v1071 = vcombine.low %v1046, %v1054
        %v1073 = vunpack.c.l.s4 1934713408
        %v1074 = vunpack.c.0.s8 %v1073
        %v1075 = vlaneseq
        %v1076 = vshrl.u32 %v1075, 7
        %v1077 = vsub.s32 %v1074, %v1076
        %v1078 = vrot.slane %v1071, %v1077
        %v1079 = vcombine.low %v1062, %v1070
        %v1081 = vunpack.c.l.s4 1934713408
        %v1082 = vunpack.c.0.s8 %v1081
        %v1083 = vlaneseq
        %v1084 = vshrl.u32 %v1083, 7
        %v1085 = vsub.s32 %v1082, %v1084
        %v1086 = vrot.slane %v1079, %v1085
        %v1087 = vcombine.low %v1078, %v1086
        %v1088 = vcombine.high %v1078, %v1086
        %1090 = vrot.lane.b32.xlu0 %v1088, 16
        %v1091 = vpop.permute.xlu0 %1090
        %v1093 = vsel %vm762, %v1087, %v1091
        %v1094 = vpack.c.bf16 %v1093, %v1093
        %v1095 = vld [vmem:[#allocation7] sm:$0xf]
        %v1096 = vld [vmem:[#allocation7 + $0x4] sm:$0xf]
        %v1097 = vld [vmem:[#allocation7 + $0x8] sm:$0xf]
        %v1098 = vld [vmem:[#allocation7 + $0xc] sm:$0xf]
        %v1099 = vld [vmem:[%s4] sm:$0x1]
        %v1101 = vlaneseq
        %v1102 = vshrl.u32 %v1101, 7
        %v1103 = vsub.s32 0, %v1102
        %v1104 = vrot.slane %v1099, %v1103
        %v1110 = vunpack.c.l.b16 %v1095
        %v1111 = vunpack.c.l.b16 %v1096
        %v1112 = vunpack.c.l.b16 %v1097
        %v1113 = vunpack.c.l.b16 %v1098
        %v1114 = vpack.c.b16 %v1111, %v1110
        %v1115 = vpack.c.b16 %v1113, %v1112
        %v1119 = vsel %vm348, %v1094, 0
        %1121 = vmatprep.subr.bf16.mxu0 0
        %1122 = vmatpush1.bf16.msra.mxu0 %v1114
        %1123 = vmatprep.subr.bf16.mxu0 0
        %1124 = vmatpush1.bf16.msra.mxu0 %v1115
        %1125 = vmatprep.subr.bf16.mxu0 0
        %1126 = vmatpush1.bf16.msra.mxu0 0
        %1127 = vmatprep.subr.bf16.mxu0 0
        %1128 = vmatpush1.bf16.msra.mxu0 0
        %1129 = vmatprep.subr.bf16.mxu0 0
        %1130 = vmatpush1.bf16.msra.mxu0 0
        %1131 = vmatprep.subr.bf16.mxu0 0
        %1132 = vmatpush1.bf16.msra.mxu0 0
        %1133 = vmatprep.subr.bf16.mxu0 0
        %1134 = vmatpush1.bf16.msra.mxu0 0
        %1135 = vmatprep.subr.bf16.mxu0 0
        %1136 = vmatpush1.bf16.msra.mxu0 0
        %1137 = vmatprep.subr.bf16.mxu0 0
        %1138 = vmatpush1.bf16.msra.mxu0 0
        %1139 = vmatprep.subr.bf16.mxu0 0
        %1140 = vmatpush1.bf16.msra.mxu0 0
        %1141 = vmatprep.subr.bf16.mxu0 0
        %1142 = vmatpush1.bf16.msra.mxu0 0
        %1143 = vmatprep.subr.bf16.mxu0 0
        %1144 = vmatpush1.bf16.msra.mxu0 0
        %1145 = vmatprep.subr.bf16.mxu0 0
        %1146 = vmatpush1.bf16.msra.mxu0 0
        %1147 = vmatprep.subr.bf16.mxu0 0
        %1148 = vmatpush1.bf16.msra.mxu0 0
        %1149 = vmatprep.subr.bf16.mxu0 0
        %1150 = vmatpush1.bf16.msra.mxu0 0
        %1151 = vmatprep.subr.bf16.mxu0 0
        %1152 = vmatpush1.bf16.msra.mxu0 0
        %1153 = vmatprep.mubr.bf16.mxu0 0
        %1154 = vmatmul.mubr.bf16.gmra.mrb[0].mxu0 %v1119
        %v1155 = vpop.f32.mrb[0].mxu0
        %v1156 = vadd.f32 %v1104, %v1155
        %v1157 = vpop.f32.mrb[0].mxu0
        %v1158 = vpop.f32.mrb[0].mxu0
        %v1159 = vpop.f32.mrb[0].mxu0
        %1160 = vdwg.mxu0
        %v1161 = vunpack.c.l.bf16 %v324
        %v1162 = vadd.f32 %v1156, %v1161
        %v1163 = vld [vmem:[%s5] sm:$0x1]
        %v1164 = vld [vmem:[%s6] sm:$0x1]
        %v1165 = vsel %vm348, %v1162, 0.0
        %1166 = vadd.xlane.f32.xlu0 %v1165
        %v1167 = vpop.xlane.xlu0 %1166
        %v1168 = vrcp.pop 32.0
        %v1169 = vmul.f32 %v1167, %v1168
        %v1170 = vsub.f32 %v1162, %v1169
        %v1171 = vmul.f32 %v1170, %v1170
        %v1172 = vsel %vm348, %v1171, 0.0
        %1173 = vadd.xlane.f32.xlu0 %v1172
        %v1174 = vpop.xlane.xlu0 %1173
        %v1175 = vmul.f32 %v1174, %v1168
        %v1176 = vadd.f32 %v1175, 1e-12
        %v1177 = vrsqrt.pop %v1176
        %v1178 = vmul.f32 %v1170, %v1177
        %v1180 = vlaneseq
        %v1181 = vshrl.u32 %v1180, 7
        %v1182 = vsub.s32 0, %v1181
        %v1183 = vrot.slane %v1163, %v1182
        %v1185 = vmul.f32 %v1178, %v1183
        %v1187 = vlaneseq
        %v1188 = vshrl.u32 %v1187, 7
        %v1189 = vsub.s32 0, %v1188
        %v1190 = vrot.slane %v1164, %v1189
        %v1192 = vadd.f32 %v1185, %v1190
        %v1193 = vpack.c.bf16 %v1192, %v1192
        %vm1194 = vcmask 257024
        %1195 = vst.msk [vmem:[%s322] sm:$0xf] %vm1194, %v1193
        %s1196 = sand.u32 %s185, 1
        %s1197 = scalar_lea.sflag [#allocation4], %s1196
        %s1198 = sand.u32 %s185, 1
        %s1199 = smul.addr %s1198, 4
        %s1200 = scalar_lea.vmem [#allocation8], %s1199
        // Predicated region
        $region61: #{tpu_custom_call.1} parent=47 // pred_check
          %p1201 = pneg %p195
        $region62: #{tpu_custom_call.1} parent=47 // pred_check_branch
          %1203 = sbr.rel (%p1201) target = $region64
        $region63: #{tpu_custom_call.1} parent=47 // pred_region
          %s1205 = ssub.s32 64, 64
          %1206 = vsyncadd %s1197, %s1205
          %s1207 = smul.addr %s25, 64
          %s1208 = scalar_lea.hbm %s7, %s1207
          %s1210 = sshll.u32 %s1200, 4
          %s1211 = int_to_ptr.vmem [resolvable:$true] %s1210
          %1213 = dma.vmem_to_hbm [thread:$0]  %s1211, 64, %s1208, %s1197
        $region64: #{tpu_custom_call.1} parent=47 // pred_fallthru
          _
      $region48: #{tpu_custom_call.1} parent=5 // pred_fallthru
        _
      %p1214 = scmp.le.s32.totalorder 2, %s20
      // Predicated region
      $region65: #{tpu_custom_call.1} parent=5 // pred_check
        %p1215 = pneg %p1214
      $region66: #{tpu_custom_call.1} parent=5 // pred_check_branch
        %1217 = sbr.rel (%p1215) target = $region68
      $region67: #{tpu_custom_call.1} parent=5 // pred_region
        %s1218 = ssub.s32 %s20, 2
        // Predicated region
        $region69: #{tpu_custom_call.1} parent=67 // pred_check
          %p1219 = pneg %p201
        $region70: #{tpu_custom_call.1} parent=67 // pred_check_branch
          %1221 = sbr.rel (%p1219) target = $region72
        $region71: #{tpu_custom_call.1} parent=67 // pred_region
          %s1222 = sand.u32 %s186, 1
          %s1223 = scalar_lea.sflag [#allocation4], %s1222
          %s1224 = sand.u32 %s186, 1
          %s1225 = smul.addr %s1224, 4
          %s1226 = scalar_lea.vmem [#allocation8], %s1225
          %1227 = dma.done %s1223, 64
        $region72: #{tpu_custom_call.1} parent=67 // pred_fallthru
          _
      $region68: #{tpu_custom_call.1} parent=5 // pred_fallthru
        _
    $region6: #{tpu_custom_call.1} parent=1 // loop_footer
      %s24 = sadd.s32 1, %s20
    $region7: #{tpu_custom_call.1} parent=1 // loop_footer_branch
      %19 = sbr.rel target = $region3
    $region8: #{tpu_custom_call.1} parent=1 // loop_exit
      _
    %1228 = vsyncpa [#allocation3], 1
    %s1229 = scalar_lea.sflag [#allocation3], 1
    %1230 = vsyncpa %s1229, 1
    %1231 = vsyncpa [#allocation6], 1
    %1232 = vsyncpa [#allocation4], 1
    %s1233 = scalar_lea.sflag [#allocation4], 1
    %1234 = vsyncpa %s1233, 1

</llo_original>
